<compile_context>
chip_gen: v7x
topology: tpu7x:2x2x1
jax: 0.10.0
libtpu: 0.0.40
codegen_flags: <defaults>
</compile_context>

<pallas_src>
import functools

import jax
import jax.numpy as jnp
from jax.experimental import pallas as pl
from jax.experimental.pallas import tpu as pltpu


def _round_up(x, m):
    return ((x + m - 1) // m) * m


def _vmem_capacity_bytes():
    """Per-core VMEM capacity; conservative (v7x) fallback if the query fails."""
    try:
        cap = getattr(pltpu.get_tpu_info(), "vmem_capacity_bytes", None)
        if cap:
            return int(cap)
    except Exception:
        pass
    return 64 * 1024 * 1024


def _ffn_kernel(x_ref, w1_ref, b1_ref, w2_ref, b2_ref, gamma_ref, beta_ref,
                o_ref, acc_ref, *, d_valid, mxu_dtype):
    """Grid = (m_tiles, hid_chunks); the hidden-chunk axis (innermost) is a reduction."""
    k = pl.program_id(1)
    nk = pl.num_programs(1)

    # Initialize the f32 accumulator with residual + output bias (added once).
    @pl.when(k == 0)
    def _():
        acc_ref[...] = x_ref[...].astype(jnp.float32) + b2_ref[...]

    # First linear (this d_hid chunk) + ReLU.  MXU operands in mxu_dtype, f32 accumulate.
    x = x_ref[...].astype(mxu_dtype)
    h = jnp.dot(x, w1_ref[...], preferred_element_type=jnp.float32)
    h = jnp.maximum(h + b1_ref[...], 0.0)

    # Second linear chunk, accumulated in f32.
    acc_ref[...] += jnp.dot(h.astype(mxu_dtype), w2_ref[...],
                            preferred_element_type=jnp.float32)

    # Epilogue: LayerNorm over the true d_in lanes, write the output tile.
    @pl.when(k == nk - 1)
    def _():
        y = acc_ref[...]                      # (TM, d_in_p) f32; padded lanes are 0
        d_pad = y.shape[-1]
        inv_d = 1.0 / float(d_valid)
        mean = jnp.sum(y, axis=-1, keepdims=True) * inv_d
        centered = y - mean
        c2 = centered * centered
        if d_valid != d_pad:                  # mask padded lanes out of the variance
            lane = jax.lax.broadcasted_iota(jnp.int32, (1, d_pad), 1)
            c2 = jnp.where(lane < d_valid, c2, 0.0)
        var = jnp.sum(c2, axis=-1, keepdims=True) * inv_d
        inv = jax.lax.rsqrt(var + 1e-6)
        o_ref[...] = (centered * inv * gamma_ref[...] + beta_ref[...]).astype(o_ref.dtype)


def _ffn_plan(d_in, d_hid, *, mxu_dtype, hid_chunk):
    """Decide padding, hidden chunking, and weight residency/buffering."""
    d_in_p = _round_up(d_in, 128)
    d_hid_p = _round_up(d_hid, 128)
    vmem_cap = _vmem_capacity_bytes()
    w_elt = jnp.dtype(mxu_dtype).itemsize
    w_bytes = 2 * d_in_p * d_hid_p * w_elt          # W1^T + W2^T, single-buffered

    resident = w_bytes <= int(0.45 * vmem_cap)
    if resident:
        tk, n_k = d_hid_p, 1
    else:
        hid_chunk = max(128, _round_up(hid_chunk, 128))
        n_k = -(-d_hid_p // hid_chunk)              # ceil
        tk = _round_up(-(-d_hid_p // n_k), 128)     # near-even chunks, <= ~127 pad lanes
        d_hid_p = n_k * tk

    # Only bother single-buffering resident weights when the saving is meaningful.
    single_buffer_weights = resident and w_bytes >= (4 * 1024 * 1024)

    return dict(d_in_p=d_in_p, d_hid_p=d_hid_p, tk=tk, n_k=n_k,
                resident=resident, single_buffer_weights=single_buffer_weights,
                vmem_cap=vmem_cap)


def prepare_ffn_params(w1, b1, w2, b2, gamma, beta, *, mxu_dtype=None, hid_chunk=1024):
    """Transpose + pad the parameters once (hoist out of the per-step hot path).

    w1: [d_hid, d_in], b1: [d_hid], w2: [d_in, d_hid], b2/gamma/beta: [d_in]
    (PyTorch nn.Linear layout).
    """
    d_hid, d_in = w1.shape
    assert w2.shape == (d_in, d_hid)
    if mxu_dtype is None:
        mxu_dtype = w1.dtype

    plan = _ffn_plan(d_in, d_hid, mxu_dtype=mxu_dtype, hid_chunk=hid_chunk)
    d_in_p, d_hid_p = plan["d_in_p"], plan["d_hid_p"]

    w1t = jnp.pad(jnp.asarray(w1, mxu_dtype).T,
                  ((0, d_in_p - d_in), (0, d_hid_p - d_hid)))
    w2t = jnp.pad(jnp.asarray(w2, mxu_dtype).T,
                  ((0, d_hid_p - d_hid), (0, d_in_p - d_in)))
    b1p = jnp.pad(jnp.asarray(b1, jnp.float32), (0, d_hid_p - d_hid)).reshape(1, d_hid_p)
    b2p = jnp.pad(jnp.asarray(b2, jnp.float32), (0, d_in_p - d_in)).reshape(1, d_in_p)
    gp = jnp.pad(jnp.asarray(gamma, jnp.float32), (0, d_in_p - d_in)).reshape(1, d_in_p)
    bp = jnp.pad(jnp.asarray(beta, jnp.float32), (0, d_in_p - d_in)).reshape(1, d_in_p)

    return dict(plan=plan, w1t=w1t, b1p=b1p, w2t=w2t, b2p=b2p, gamma=gp, beta=bp,
                d_in=d_in, d_hid=d_hid, mxu_dtype=mxu_dtype)


def _choose_tm(M, tile_m):
    """Padding-aware token-tile size; prefers >= 2 m-tiles (v7x megacore)."""
    tile_m = max(128, _round_up(tile_m, 128))
    if _round_up(M, 128) <= 128:
        return 128
    best_key, best_tm = None, 128
    for tm in range(128, tile_m + 1, 128):
        m_pad = _round_up(M, tm)
        n_tiles = m_pad // tm
        key = (0 if n_tiles >= 2 else 1, m_pad - M, -tm)
        if best_key is None or key < best_key:
            best_key, best_tm = key, tm
    return best_tm


def positionwise_feed_forward(x, w1=None, b1=None, w2=None, b2=None, gamma=None,
                              beta=None, *, params=None, mxu_dtype=None,
                              tile_m=256, hid_chunk=1024):
    """x: [B, S, d_in] -> [B, S, d_in].  Pass `params=prepare_ffn_params(...)` to
    reuse pre-transposed/padded weights across calls (recommended)."""
    B, S, d_in = x.shape
    if params is None:
        if mxu_dtype is None:
            mxu_dtype = x.dtype
        params = prepare_ffn_params(w1, b1, w2, b2, gamma, beta,
                                    mxu_dtype=mxu_dtype, hid_chunk=hid_chunk)
    assert params["d_in"] == d_in, "prepared params do not match input feature dim"

    plan = params["plan"]
    d_in_p, tk, n_k = plan["d_in_p"], plan["tk"], plan["n_k"]
    mxu_dtype = params["mxu_dtype"]
    out_dtype = x.dtype

    M = B * S
    tm = _choose_tm(M, tile_m)
    m_pad = _round_up(M, tm)

    x2d = jnp.pad(x.reshape(M, d_in), ((0, m_pad - M), (0, d_in_p - d_in)))

    # Constant-index weight blocks need no double buffering when resident & large.
    w_pipe = {}
    if plan["single_buffer_weights"]:
        w_pipe = dict(pipeline_mode=pl.Buffered(1))

    in_specs = [
        pl.BlockSpec((tm, d_in_p), lambda i, k: (i, 0)),             # x tile
        pl.BlockSpec((d_in_p, tk), lambda i, k: (0, k), **w_pipe),   # W1^T chunk
        pl.BlockSpec((1, tk), lambda i, k: (0, k), **w_pipe),        # b1 chunk (f32)
        pl.BlockSpec((tk, d_in_p), lambda i, k: (k, 0), **w_pipe),   # W2^T chunk
        pl.BlockSpec((1, d_in_p), lambda i, k: (0, 0)),              # b2 (f32)
        pl.BlockSpec((1, d_in_p), lambda i, k: (0, 0)),              # gamma (f32)
        pl.BlockSpec((1, d_in_p), lambda i, k: (0, 0)),              # beta (f32)
    ]

    # VMEM limit from the actual footprint + headroom, capped at 80% of capacity.
    x_it = jnp.dtype(x.dtype).itemsize
    o_it = jnp.dtype(out_dtype).itemsize
    w_it = jnp.dtype(mxu_dtype).itemsize
    n_wbuf = 1 if plan["single_buffer_weights"] else 2
    footprint = (
        tm * d_in_p * (2 * x_it + 2 * o_it + 4)        # x bufs + out bufs + f32 acc
        + 2 * d_in_p * tk * w_it * n_wbuf              # W1^T + W2^T buffers
        + 2 * 8 * (tk + 3 * d_in_p) * 4                # biases/gamma/beta (sublane-padded)
    )
    vmem_limit = int(min(0.8 * plan["vmem_cap"],
                         max(32 * 1024 * 1024, footprint * 1.25 + (4 << 20))))

    kernel = functools.partial(_ffn_kernel, d_valid=d_in, mxu_dtype=mxu_dtype)

    out2d = pl.pallas_call(
        kernel,
        out_shape=jax.ShapeDtypeStruct((m_pad, d_in_p), out_dtype),
        grid_spec=pltpu.PrefetchScalarGridSpec(
            num_scalar_prefetch=0,
            grid=(m_pad // tm, n_k),
            in_specs=in_specs,
            out_specs=pl.BlockSpec((tm, d_in_p), lambda i, k: (i, 0)),
            scratch_shapes=[pltpu.VMEM((tm, d_in_p), jnp.float32)],
        ),
        compiler_params=pltpu.CompilerParams(
            dimension_semantics=("parallel", "arbitrary"),
            vmem_limit_bytes=vmem_limit,
        ),
    )(x2d, params["w1t"], params["b1p"], params["w2t"],
      params["b2p"], params["gamma"], params["beta"])

    return out2d[:M, :d_in].reshape(B, S, d_in)


def _reference(x, w1, b1, w2, b2, gamma, beta):
    residual = x
    h = jnp.maximum(x @ w1.T + b1, 0.0)
    y = h @ w2.T + b2 + residual
    mean = jnp.mean(y, axis=-1, keepdims=True)
    var = jnp.mean((y - mean) ** 2, axis=-1, keepdims=True)
    return (y - mean) / jnp.sqrt(var + 1e-6) * gamma + beta


if __name__ == "__main__":
    # Small shapes consistent with the module: batch=2, seq=8, d_in=32, d_hid=64.
    B, S, d_in, d_hid = 2, 8, 32, 64

    key = jax.random.PRNGKey(0)
    kx, kw1, kb1, kw2, kb2 = jax.random.split(key, 5)

    x = jax.random.normal(kx, (B, S, d_in), dtype=jnp.float32)
    w1 = jax.random.normal(kw1, (d_hid, d_in), dtype=jnp.float32) * 0.1
    b1 = jax.random.normal(kb1, (d_hid,), dtype=jnp.float32) * 0.1
    w2 = jax.random.normal(kw2, (d_in, d_hid), dtype=jnp.float32) * 0.1
    b2 = jax.random.normal(kb2, (d_in,), dtype=jnp.float32) * 0.1
    gamma = jnp.ones((d_in,), dtype=jnp.float32)   # LayerNorm weight init
    beta = jnp.zeros((d_in,), dtype=jnp.float32)   # LayerNorm bias init

    ref = _reference(x, w1, b1, w2, b2, gamma, beta)

    # Parameter prep hoisted out of the hot path (transpose + pad once).
    params_f32 = prepare_ffn_params(w1, b1, w2, b2, gamma, beta, mxu_dtype=jnp.float32)
    out = jax.block_until_ready(positionwise_feed_forward(x, params=params_f32))
    assert out.shape == (B, S, d_in)
    assert jnp.allclose(out, ref, atol=1e-4, rtol=1e-4), "f32 mismatch vs reference"

    # Mixed precision: bf16 MXU operands, f32 accumulator/residual/LayerNorm.
    params_bf16 = prepare_ffn_params(w1, b1, w2, b2, gamma, beta, mxu_dtype=jnp.bfloat16)
    out_bf16 = jax.block_until_ready(positionwise_feed_forward(x, params=params_bf16))
    assert out_bf16.shape == (B, S, d_in)
    assert float(jnp.max(jnp.abs(out_bf16 - ref))) < 0.1, "bf16-MXU path diverged"

    print("KERNEL_OK")
</pallas_src>

<mosaic_0001>
module attributes {stable_mosaic.version = 11 : i64} {
  func.func @_ffn_kernel(%arg0: i32, %arg1: i32, %arg2: memref<128x128xf32, #tpu.memory_space<vmem>>, %arg3: memref<128x128xf32, #tpu.memory_space<vmem>>, %arg4: memref<1x128xf32, #tpu.memory_space<vmem>>, %arg5: memref<128x128xf32, #tpu.memory_space<vmem>>, %arg6: memref<1x128xf32, #tpu.memory_space<vmem>>, %arg7: memref<1x128xf32, #tpu.memory_space<vmem>>, %arg8: memref<1x128xf32, #tpu.memory_space<vmem>>, %arg9: memref<128x128xf32, #tpu.memory_space<vmem>>, %arg10: memref<128x128xf32, #tpu.memory_space<vmem>>) attributes {dimension_semantics = [#tpu.dimension_semantics<parallel>, #tpu.dimension_semantics<arbitrary>], iteration_bounds = array<i64: 1, 1>, scalar_prefetch = 0 : i64, scratch_operands = 1 : i64, tpu.core_type = #tpu.core_type<tc>, window_params = [{transform_indices = @transform_0, window_bounds = array<i64: 128, 128>}, {transform_indices = @transform_1, window_bounds = array<i64: 128, 128>}, {transform_indices = @transform_2, window_bounds = array<i64: 1, 128>}, {transform_indices = @transform_3, window_bounds = array<i64: 128, 128>}, {pipeline_mode = #tpu.pipeline_mode<synchronous>, transform_indices = @transform_4, window_bounds = array<i64: 1, 128>}, {pipeline_mode = #tpu.pipeline_mode<synchronous>, transform_indices = @transform_5, window_bounds = array<i64: 1, 128>}, {pipeline_mode = #tpu.pipeline_mode<synchronous>, transform_indices = @transform_6, window_bounds = array<i64: 1, 128>}, {transform_indices = @transform_7, window_bounds = array<i64: 128, 128>}]} {
    %c0_i32 = arith.constant 0 : i32
    %0 = arith.cmpi eq, %arg1, %c0_i32 : i32
    %1 = arith.extui %0 : i1 to i32
    %c0_i32_0 = arith.constant 0 : i32
    %2 = arith.cmpi ne, %1, %c0_i32_0 : i32
    scf.if %2 {
      %c0_16 = arith.constant 0 : index
      %c0_17 = arith.constant 0 : index
      %19 = vector.load %arg2[%c0_16, %c0_17] : memref<128x128xf32, #tpu.memory_space<vmem>>, vector<128x128xf32>
      %c0_18 = arith.constant 0 : index
      %c0_19 = arith.constant 0 : index
      %20 = vector.load %arg6[%c0_18, %c0_19] : memref<1x128xf32, #tpu.memory_space<vmem>>, vector<1x128xf32>
      %21 = vector.broadcast %20 : vector<1x128xf32> to vector<128x128xf32>
      %22 = arith.addf %19, %21 : vector<128x128xf32>
      %c0_20 = arith.constant 0 : index
      %c0_21 = arith.constant 0 : index
      %23 = vector.load %arg10[%c0_20, %c0_21] : memref<128x128xf32, #tpu.memory_space<vmem>>, vector<128x128xf32>
      tpu.vector_store %arg10[%c0_20, %c0_21], %22 {strides = array<i32>} : memref<128x128xf32, #tpu.memory_space<vmem>>, vector<128x128xf32>,
    } else {
    }
    %c0 = arith.constant 0 : index
    %c0_1 = arith.constant 0 : index
    %3 = vector.load %arg2[%c0, %c0_1] : memref<128x128xf32, #tpu.memory_space<vmem>>, vector<128x128xf32>
    %c0_2 = arith.constant 0 : index
    %c0_3 = arith.constant 0 : index
    %4 = vector.load %arg3[%c0_2, %c0_3] : memref<128x128xf32, #tpu.memory_space<vmem>>, vector<128x128xf32>
    %cst = arith.constant dense<0.000000e+00> : vector<128x128xf32>
    %5 = tpu.matmul %3, %4, %cst {dimension_numbers = #tpu.dot_dimension_numbers<[1], [0], [0], [1], [0, 0, 1, 1], [], []>} : vector<128x128xf32>, vector<128x128xf32>, vector<128x128xf32> -> vector<128x128xf32>
    %c0_4 = arith.constant 0 : index
    %c0_5 = arith.constant 0 : index
    %6 = vector.load %arg4[%c0_4, %c0_5] : memref<1x128xf32, #tpu.memory_space<vmem>>, vector<1x128xf32>
    %7 = vector.broadcast %6 : vector<1x128xf32> to vector<128x128xf32>
    %8 = arith.addf %5, %7 : vector<128x128xf32>
    %cst_6 = arith.constant 0.000000e+00 : f32
    %9 = vector.broadcast %cst_6 : f32 to vector<128x128xf32>
    %10 = arith.maximumf %8, %9 : vector<128x128xf32>
    %c0_7 = arith.constant 0 : index
    %c0_8 = arith.constant 0 : index
    %11 = vector.load %arg10[%c0_7, %c0_8] : memref<128x128xf32, #tpu.memory_space<vmem>>, vector<128x128xf32>
    %c0_9 = arith.constant 0 : index
    %c0_10 = arith.constant 0 : index
    %12 = vector.load %arg5[%c0_9, %c0_10] : memref<128x128xf32, #tpu.memory_space<vmem>>, vector<128x128xf32>
    %cst_11 = arith.constant dense<0.000000e+00> : vector<128x128xf32>
    %13 = tpu.matmul %10, %12, %cst_11 {dimension_numbers = #tpu.dot_dimension_numbers<[1], [0], [0], [1], [0, 0, 1, 1], [], []>} : vector<128x128xf32>, vector<128x128xf32>, vector<128x128xf32> -> vector<128x128xf32>
    %14 = arith.addf %11, %13 : vector<128x128xf32>
    %c0_12 = arith.constant 0 : index
    %c0_13 = arith.constant 0 : index
    %15 = vector.load %arg10[%c0_12, %c0_13] : memref<128x128xf32, #tpu.memory_space<vmem>>, vector<128x128xf32>
    tpu.vector_store %arg10[%c0_12, %c0_13], %14 {strides = array<i32>} : memref<128x128xf32, #tpu.memory_space<vmem>>, vector<128x128xf32>,
    %c0_i32_14 = arith.constant 0 : i32
    %16 = arith.cmpi eq, %arg1, %c0_i32_14 : i32
    %17 = arith.extui %16 : i1 to i32
    %c0_i32_15 = arith.constant 0 : i32
    %18 = arith.cmpi ne, %17, %c0_i32_15 : i32
    scf.if %18 {
      %c0_16 = arith.constant 0 : index
      %c0_17 = arith.constant 0 : index
      %19 = vector.load %arg10[%c0_16, %c0_17] : memref<128x128xf32, #tpu.memory_space<vmem>>, vector<128x128xf32>
      %cst_18 = arith.constant dense<0.000000e+00> : vector<128xf32>
      %20 = vector.multi_reduction <add>, %19, %cst_18 [1] : vector<128x128xf32> to vector<128xf32>
      %21 = vector.shape_cast %20 : vector<128xf32> to vector<128x1xf32>
      %cst_19 = arith.constant 3.125000e-02 : f32
      %22 = vector.broadcast %cst_19 : f32 to vector<128x1xf32>
      %23 = arith.mulf %21, %22 : vector<128x1xf32>
      %24 = vector.broadcast %23 : vector<128x1xf32> to vector<128x128xf32>
      %25 = arith.subf %19, %24 : vector<128x128xf32>
      %26 = arith.mulf %25, %25 : vector<128x128xf32>
      %27 = tpu.iota {dimensions = array<i32: 1>} : vector<1x128xi32>
      %c32_i32 = arith.constant 32 : i32
      %28 = vector.broadcast %c32_i32 : i32 to vector<1x128xi32>
      %29 = arith.cmpi slt, %27, %28 : vector<1x128xi32>
      %cst_20 = arith.constant 0.000000e+00 : f32
      %30 = vector.shape_cast %29 : vector<1x128xi1> to vector<1x128xi1>
      %31 = vector.broadcast %30 : vector<1x128xi1> to vector<128x128xi1>
      %32 = vector.broadcast %cst_20 : f32 to vector<128x128xf32>
      %33 = arith.select %31, %26, %32 : vector<128x128xi1>, vector<128x128xf32>
      %cst_21 = arith.constant dense<0.000000e+00> : vector<128xf32>
      %34 = vector.multi_reduction <add>, %33, %cst_21 [1] : vector<128x128xf32> to vector<128xf32>
      %35 = vector.shape_cast %34 : vector<128xf32> to vector<128x1xf32>
      %cst_22 = arith.constant 3.125000e-02 : f32
      %36 = vector.broadcast %cst_22 : f32 to vector<128x1xf32>
      %37 = arith.mulf %35, %36 : vector<128x1xf32>
      %cst_23 = arith.constant 9.99999997E-7 : f32
      %38 = vector.broadcast %cst_23 : f32 to vector<128x1xf32>
      %39 = arith.addf %37, %38 : vector<128x1xf32>
      %40 = math.rsqrt %39 : vector<128x1xf32>
      %41 = vector.broadcast %40 : vector<128x1xf32> to vector<128x128xf32>
      %42 = arith.mulf %25, %41 : vector<128x128xf32>
      %c0_24 = arith.constant 0 : index
      %c0_25 = arith.constant 0 : index
      %43 = vector.load %arg7[%c0_24, %c0_25] : memref<1x128xf32, #tpu.memory_space<vmem>>, vector<1x128xf32>
      %44 = vector.broadcast %43 : vector<1x128xf32> to vector<128x128xf32>
      %45 = arith.mulf %42, %44 : vector<128x128xf32>
      %c0_26 = arith.constant 0 : index
      %c0_27 = arith.constant 0 : index
      %46 = vector.load %arg8[%c0_26, %c0_27] : memref<1x128xf32, #tpu.memory_space<vmem>>, vector<1x128xf32>
      %47 = vector.broadcast %46 : vector<1x128xf32> to vector<128x128xf32>
      %48 = arith.addf %45, %47 : vector<128x128xf32>
      %c0_28 = arith.constant 0 : index
      %c0_29 = arith.constant 0 : index
      %49 = vector.load %arg9[%c0_28, %c0_29] : memref<128x128xf32, #tpu.memory_space<vmem>>, vector<128x128xf32>
      tpu.vector_store %arg9[%c0_28, %c0_29], %48 {strides = array<i32>} : memref<128x128xf32, #tpu.memory_space<vmem>>, vector<128x128xf32>,
    } else {
    }
    return
  }
  func.func @transform_0(%arg0: i32, %arg1: i32) -> (i32, i32) {
    %c0_i32 = arith.constant 0 : i32
    %c0_i32_0 = arith.constant 0 : i32
    return %arg0, %c0_i32 : i32, i32
  }
  func.func @transform_1(%arg0: i32, %arg1: i32) -> (i32, i32) {
    %c0_i32 = arith.constant 0 : i32
    %c0_i32_0 = arith.constant 0 : i32
    return %c0_i32, %arg1 : i32, i32
  }
  func.func @transform_2(%arg0: i32, %arg1: i32) -> (i32, i32) {
    %c0_i32 = arith.constant 0 : i32
    %c0_i32_0 = arith.constant 0 : i32
    return %c0_i32, %arg1 : i32, i32
  }
  func.func @transform_3(%arg0: i32, %arg1: i32) -> (i32, i32) {
    %c0_i32 = arith.constant 0 : i32
    %c0_i32_0 = arith.constant 0 : i32
    return %arg1, %c0_i32 : i32, i32
  }
  func.func @transform_4(%arg0: i32, %arg1: i32) -> (i32, i32) {
    %c0_i32 = arith.constant 0 : i32
    %c0_i32_0 = arith.constant 0 : i32
    %c0_i32_1 = arith.constant 0 : i32
    return %c0_i32, %c0_i32_0 : i32, i32
  }
  func.func @transform_5(%arg0: i32, %arg1: i32) -> (i32, i32) {
    %c0_i32 = arith.constant 0 : i32
    %c0_i32_0 = arith.constant 0 : i32
    %c0_i32_1 = arith.constant 0 : i32
    return %c0_i32, %c0_i32_0 : i32, i32
  }
  func.func @transform_6(%arg0: i32, %arg1: i32) -> (i32, i32) {
    %c0_i32 = arith.constant 0 : i32
    %c0_i32_0 = arith.constant 0 : i32
    %c0_i32_1 = arith.constant 0 : i32
    return %c0_i32, %c0_i32_0 : i32, i32
  }
  func.func @transform_7(%arg0: i32, %arg1: i32) -> (i32, i32) {
    %c0_i32 = arith.constant 0 : i32
    %c0_i32_0 = arith.constant 0 : i32
    return %arg0, %c0_i32 : i32, i32
  }
}

</mosaic_0001>

<llo_original>
// kernel: tpu_custom_call.1
$region0: #{tpu_custom_call.1}
  #allocation0 [shape = 'u32[]', space=smem, size = 0x4, offset = 0x4, fixed_abs, tag = 'smem constant byte address 0x4 - core index']
  #allocation1 [shape = 'u32[144,128]{1,0:T(1,128)}', space=vmem, size = 0x12000, scoped, tag = 'internal scratch']
  #allocation2 [shape = 'f32[128,128]{1,0:T(8,128)}', space=vmem, size = 0x10000, scoped, tag = 'scratch operand']
  %s0 = inlined_call_operand.hbm [shape: f32[128,128], index: 0, kind: input, shape index: {}]
  %s1 = inlined_call_operand.hbm [shape: f32[128,128], index: 1, kind: input, shape index: {}]
  %s2 = inlined_call_operand.vmem [shape: f32[1,128], index: 2, kind: input, shape index: {}]
  %s3 = inlined_call_operand.hbm [shape: f32[128,128], index: 3, kind: input, shape index: {}]
  %s4 = inlined_call_operand.vmem [shape: f32[1,128], index: 4, kind: input, shape index: {}]
  %s5 = inlined_call_operand.vmem [shape: f32[1,128], index: 5, kind: input, shape index: {}]
  %s6 = inlined_call_operand.vmem [shape: f32[1,128], index: 6, kind: input, shape index: {}]
  %s7 = inlined_call_operand.hbm [shape: f32[128,128], index: 7, kind: output, shape index: {}]
  %s8 = sld [smem:[#allocation0]]
  $region58: #{tpu_custom_call.1} parent=0
    _
  %s10 = ssub.s32 1, %s8
  %s11 = scalar_select 0, %s10, %s8
  $region1: #{tpu_custom_call.1} parent=0
    #allocation3 [shape = 'u8[65536]{0}', space=vmem, size = 0x10000, scoped, tag = 'input window, operand 0, single buffered']
    #allocation4 [shape = 's32[1]{0}', space=sflag, size = 0x4, scoped, tag = 'scoped memory for tpu_custom_call.1']
    #allocation5 [shape = 's32[1]{0}', space=sflag, size = 0x4, scoped, tag = 'scoped memory for tpu_custom_call.1']
    #allocation6 [shape = 'u8[65536]{0}', space=vmem, size = 0x10000, scoped, tag = 'input window, operand 1, single buffered']
    #allocation7 [shape = 's32[1]{0}', space=sflag, size = 0x4, scoped, tag = 'scoped memory for tpu_custom_call.1']
    #allocation8 [shape = 'u8[65536]{0}', space=vmem, size = 0x10000, scoped, tag = 'input window, operand 3, single buffered']
    #allocation9 [shape = 'u8[65536]{0}', space=vmem, size = 0x10000, scoped, tag = 'output window, operand 0, single buffered']
    %12 = vsyncpa [#allocation4], 0
    %13 = vsyncpa [#allocation7], 0
    %14 = vsyncpa [#allocation5], 0
    // Predicated region
    $region2: #{tpu_custom_call.1} parent=1 // pred_check
      _
    $region3: #{tpu_custom_call.1} parent=1 // pred_check_branch
      %16 = sbr.rel (0) target = $region5
    $region4: #{tpu_custom_call.1} parent=1 // pred_region
      %s18 = ssub.s32 2048, 2048
      %19 = vsyncadd [#allocation4], %s18
      %s20 = sshll.u32 [#allocation3], 4
      %s21 = int_to_ptr.vmem [resolvable:$true] %s20
      %26 = dma.hbm_to_vmem [thread:$0]  %s0, 2048, %s21, [#allocation4], 128, 128, 8
    $region5: #{tpu_custom_call.1} parent=1 // pred_fallthru
      _
    // Predicated region
    $region6: #{tpu_custom_call.1} parent=1 // pred_check
      _
    $region7: #{tpu_custom_call.1} parent=1 // pred_check_branch
      %28 = sbr.rel (0) target = $region9
    $region8: #{tpu_custom_call.1} parent=1 // pred_region
      %s30 = ssub.s32 2048, 2048
      %31 = vsyncadd [#allocation7], %s30
      %s32 = sshll.u32 [#allocation6], 4
      %s33 = int_to_ptr.vmem [resolvable:$true] %s32
      %38 = dma.hbm_to_vmem [thread:$0]  %s1, 2048, %s33, [#allocation7], 128, 128, 8
    $region9: #{tpu_custom_call.1} parent=1 // pred_fallthru
      _
    // Predicated region
    $region10: #{tpu_custom_call.1} parent=1 // pred_check
      _
    $region11: #{tpu_custom_call.1} parent=1 // pred_check_branch
      %40 = sbr.rel (0) target = $region13
    $region12: #{tpu_custom_call.1} parent=1 // pred_region
      _
    $region13: #{tpu_custom_call.1} parent=1 // pred_fallthru
      _
    // Predicated region
    $region14: #{tpu_custom_call.1} parent=1 // pred_check
      _
    $region15: #{tpu_custom_call.1} parent=1 // pred_check_branch
      %42 = sbr.rel (0) target = $region17
    $region16: #{tpu_custom_call.1} parent=1 // pred_region
      %s44 = ssub.s32 2048, 2048
      %45 = vsyncadd [#allocation7], %s44
      %s46 = sshll.u32 [#allocation8], 4
      %s47 = int_to_ptr.vmem [resolvable:$true] %s46
      %52 = dma.hbm_to_vmem [thread:$0]  %s3, 2048, %s47, [#allocation7], 128, 128, 8
    $region17: #{tpu_custom_call.1} parent=1 // pred_fallthru
      _
    // Predicated region
    $region18: #{tpu_custom_call.1} parent=1 // pred_check
      _
    $region19: #{tpu_custom_call.1} parent=1 // pred_check_branch
      %54 = sbr.rel (0) target = $region21
    $region20: #{tpu_custom_call.1} parent=1 // pred_region
      _
    $region21: #{tpu_custom_call.1} parent=1 // pred_fallthru
      _
    // Predicated region
    $region22: #{tpu_custom_call.1} parent=1 // pred_check
      _
    $region23: #{tpu_custom_call.1} parent=1 // pred_check_branch
      %56 = sbr.rel (0) target = $region25
    $region24: #{tpu_custom_call.1} parent=1 // pred_region
      _
    $region25: #{tpu_custom_call.1} parent=1 // pred_fallthru
      _
    // Predicated region
    $region26: #{tpu_custom_call.1} parent=1 // pred_check
      _
    $region27: #{tpu_custom_call.1} parent=1 // pred_check_branch
      %58 = sbr.rel (0) target = $region29
    $region28: #{tpu_custom_call.1} parent=1 // pred_region
      _
    $region29: #{tpu_custom_call.1} parent=1 // pred_fallthru
      _
    // Predicated region
    $region30: #{tpu_custom_call.1} parent=1 // pred_check
      _
    $region31: #{tpu_custom_call.1} parent=1 // pred_check_branch
      %60 = sbr.rel (0) target = $region33
    $region32: #{tpu_custom_call.1} parent=1 // pred_region
      %61 = dma.done [#allocation4], 2048
    $region33: #{tpu_custom_call.1} parent=1 // pred_fallthru
      _
    // Predicated region
    $region34: #{tpu_custom_call.1} parent=1 // pred_check
      _
    $region35: #{tpu_custom_call.1} parent=1 // pred_check_branch
      %63 = sbr.rel (0) target = $region37
    $region36: #{tpu_custom_call.1} parent=1 // pred_region
      %64 = dma.done [#allocation7], 2048
    $region37: #{tpu_custom_call.1} parent=1 // pred_fallthru
      _
    // Predicated region
    $region38: #{tpu_custom_call.1} parent=1 // pred_check
      _
    $region39: #{tpu_custom_call.1} parent=1 // pred_check_branch
      %66 = sbr.rel (0) target = $region41
    $region40: #{tpu_custom_call.1} parent=1 // pred_region
      %67 = dma.done [#allocation7], 2048
    $region41: #{tpu_custom_call.1} parent=1 // pred_fallthru
      _
    %p68 = scmp.eq.s32.totalorder 0, 0
    // Predicated region
    $region42: #{tpu_custom_call.1} parent=1 // pred_check
      %p69 = pneg %p68
    $region43: #{tpu_custom_call.1} parent=1 // pred_check_branch
      %71 = sbr.rel (%p69) target = $region45
    $region44: #{tpu_custom_call.1} parent=1 // pred_region
      %v72 = vld [vmem:[#allocation3] sm:$0xff]
      %v73 = vld [vmem:[#allocation3 + $0x8] sm:$0xff]
      %v74 = vld [vmem:[#allocation3 + $0x10] sm:$0xff]
      %v75 = vld [vmem:[#allocation3 + $0x18] sm:$0xff]
      %v76 = vld [vmem:[#allocation3 + $0x20] sm:$0xff]
      %v77 = vld [vmem:[#allocation3 + $0x28] sm:$0xff]
      %v78 = vld [vmem:[#allocation3 + $0x30] sm:$0xff]
      %v79 = vld [vmem:[#allocation3 + $0x38] sm:$0xff]
      %v80 = vld [vmem:[#allocation3 + $0x40] sm:$0xff]
      %v81 = vld [vmem:[#allocation3 + $0x48] sm:$0xff]
      %v82 = vld [vmem:[#allocation3 + $0x50] sm:$0xff]
      %v83 = vld [vmem:[#allocation3 + $0x58] sm:$0xff]
      %v84 = vld [vmem:[#allocation3 + $0x60] sm:$0xff]
      %v85 = vld [vmem:[#allocation3 + $0x68] sm:$0xff]
      %v86 = vld [vmem:[#allocation3 + $0x70] sm:$0xff]
      %v87 = vld [vmem:[#allocation3 + $0x78] sm:$0xff]
      %v88 = vld [vmem:[%s4] sm:$0x1]
      %v90 = vlaneseq
      %v91 = vshrl.u32 %v90, 7
      %v92 = vsub.s32 0, %v91
      %v93 = vrot.slane %v88, %v92
      %v95 = vadd.f32 %v72, %v93
      %v96 = vadd.f32 %v73, %v93
      %v97 = vadd.f32 %v74, %v93
      %v98 = vadd.f32 %v75, %v93
      %v99 = vadd.f32 %v76, %v93
      %v100 = vadd.f32 %v77, %v93
      %v101 = vadd.f32 %v78, %v93
      %v102 = vadd.f32 %v79, %v93
      %v103 = vadd.f32 %v80, %v93
      %v104 = vadd.f32 %v81, %v93
      %v105 = vadd.f32 %v82, %v93
      %v106 = vadd.f32 %v83, %v93
      %v107 = vadd.f32 %v84, %v93
      %v108 = vadd.f32 %v85, %v93
      %v109 = vadd.f32 %v86, %v93
      %v110 = vadd.f32 %v87, %v93
      %111 = vst [vmem:[#allocation2] sm:$0xff] %v95
      %112 = vst [vmem:[#allocation2 + $0x8] sm:$0xff] %v96
      %113 = vst [vmem:[#allocation2 + $0x10] sm:$0xff] %v97
      %114 = vst [vmem:[#allocation2 + $0x18] sm:$0xff] %v98
      %115 = vst [vmem:[#allocation2 + $0x20] sm:$0xff] %v99
      %116 = vst [vmem:[#allocation2 + $0x28] sm:$0xff] %v100
      %117 = vst [vmem:[#allocation2 + $0x30] sm:$0xff] %v101
      %118 = vst [vmem:[#allocation2 + $0x38] sm:$0xff] %v102
      %119 = vst [vmem:[#allocation2 + $0x40] sm:$0xff] %v103
      %120 = vst [vmem:[#allocation2 + $0x48] sm:$0xff] %v104
      %121 = vst [vmem:[#allocation2 + $0x50] sm:$0xff] %v105
      %122 = vst [vmem:[#allocation2 + $0x58] sm:$0xff] %v106
      %123 = vst [vmem:[#allocation2 + $0x60] sm:$0xff] %v107
      %124 = vst [vmem:[#allocation2 + $0x68] sm:$0xff] %v108
      %125 = vst [vmem:[#allocation2 + $0x70] sm:$0xff] %v109
      %126 = vst [vmem:[#allocation2 + $0x78] sm:$0xff] %v110
    $region45: #{tpu_custom_call.1} parent=1 // pred_fallthru
      _
    %v127 = vld [vmem:[#allocation3] sm:$0xff]
    %v128 = vld [vmem:[#allocation3 + $0x8] sm:$0xff]
    %v129 = vld [vmem:[#allocation3 + $0x10] sm:$0xff]
    %v130 = vld [vmem:[#allocation3 + $0x18] sm:$0xff]
    %v131 = vld [vmem:[#allocation3 + $0x20] sm:$0xff]
    %v132 = vld [vmem:[#allocation3 + $0x28] sm:$0xff]
    %v133 = vld [vmem:[#allocation3 + $0x30] sm:$0xff]
    %v134 = vld [vmem:[#allocation3 + $0x38] sm:$0xff]
    %v135 = vld [vmem:[#allocation3 + $0x40] sm:$0xff]
    %v136 = vld [vmem:[#allocation3 + $0x48] sm:$0xff]
    %v137 = vld [vmem:[#allocation3 + $0x50] sm:$0xff]
    %v138 = vld [vmem:[#allocation3 + $0x58] sm:$0xff]
    %v139 = vld [vmem:[#allocation3 + $0x60] sm:$0xff]
    %v140 = vld [vmem:[#allocation3 + $0x68] sm:$0xff]
    %v141 = vld [vmem:[#allocation3 + $0x70] sm:$0xff]
    %v142 = vld [vmem:[#allocation3 + $0x78] sm:$0xff]
    %v143 = vld [vmem:[#allocation6] sm:$0xff]
    %v144 = vld [vmem:[#allocation6 + $0x8] sm:$0xff]
    %v145 = vld [vmem:[#allocation6 + $0x10] sm:$0xff]
    %v146 = vld [vmem:[#allocation6 + $0x18] sm:$0xff]
    %v147 = vld [vmem:[#allocation6 + $0x20] sm:$0xff]
    %v148 = vld [vmem:[#allocation6 + $0x28] sm:$0xff]
    %v149 = vld [vmem:[#allocation6 + $0x30] sm:$0xff]
    %v150 = vld [vmem:[#allocation6 + $0x38] sm:$0xff]
    %v151 = vld [vmem:[#allocation6 + $0x40] sm:$0xff]
    %v152 = vld [vmem:[#allocation6 + $0x48] sm:$0xff]
    %v153 = vld [vmem:[#allocation6 + $0x50] sm:$0xff]
    %v154 = vld [vmem:[#allocation6 + $0x58] sm:$0xff]
    %v155 = vld [vmem:[#allocation6 + $0x60] sm:$0xff]
    %v156 = vld [vmem:[#allocation6 + $0x68] sm:$0xff]
    %v157 = vld [vmem:[#allocation6 + $0x70] sm:$0xff]
    %v158 = vld [vmem:[#allocation6 + $0x78] sm:$0xff]
    %v159 = vld [vmem:[%s2] sm:$0x1]
    %v161 = vlaneseq
    %v162 = vshrl.u32 %v161, 7
    %v163 = vsub.s32 0, %v162
    %v164 = vrot.slane %v159, %v163
    %166 = vmatprep.subr.mxu0 0.0
    %167 = vmatpush1.msra.mxu0 %v143
    %168 = vmatprep.subr.mxu0 0.0
    %169 = vmatpush1.msra.mxu0 %v144
    %170 = vmatprep.subr.mxu0 0.0
    %171 = vmatpush1.msra.mxu0 %v145
    %172 = vmatprep.subr.mxu0 0.0
    %173 = vmatpush1.msra.mxu0 %v146
    %174 = vmatprep.subr.mxu0 0.0
    %175 = vmatpush1.msra.mxu0 %v147
    %176 = vmatprep.subr.mxu0 0.0
    %177 = vmatpush1.msra.mxu0 %v148
    %178 = vmatprep.subr.mxu0 0.0
    %179 = vmatpush1.msra.mxu0 %v149
    %180 = vmatprep.subr.mxu0 0.0
    %181 = vmatpush1.msra.mxu0 %v150
    %182 = vmatprep.subr.mxu0 0.0
    %183 = vmatpush1.msra.mxu0 %v151
    %184 = vmatprep.subr.mxu0 0.0
    %185 = vmatpush1.msra.mxu0 %v152
    %186 = vmatprep.subr.mxu0 0.0
    %187 = vmatpush1.msra.mxu0 %v153
    %188 = vmatprep.subr.mxu0 0.0
    %189 = vmatpush1.msra.mxu0 %v154
    %190 = vmatprep.subr.mxu0 0.0
    %191 = vmatpush1.msra.mxu0 %v155
    %192 = vmatprep.subr.mxu0 0.0
    %193 = vmatpush1.msra.mxu0 %v156
    %194 = vmatprep.subr.mxu0 0.0
    %195 = vmatpush1.msra.mxu0 %v157
    %196 = vmatprep.subr.mxu0 0.0
    %197 = vmatpush1.msra.mxu0 %v158
    %198 = vmatprep.subr.mxu0 0.0
    %199 = vmatpush1.msra.mxu0 0.0
    %200 = vmatprep.subr.mxu0 0.0
    %201 = vmatpush1.msra.mxu0 0.0
    %202 = vmatprep.subr.mxu0 0.0
    %203 = vmatpush1.msra.mxu0 0.0
    %204 = vmatprep.subr.mxu0 0.0
    %205 = vmatpush1.msra.mxu0 0.0
    %206 = vmatprep.subr.mxu0 0.0
    %207 = vmatpush1.msra.mxu0 0.0
    %208 = vmatprep.subr.mxu0 0.0
    %209 = vmatpush1.msra.mxu0 0.0
    %210 = vmatprep.subr.mxu0 0.0
    %211 = vmatpush1.msra.mxu0 0.0
    %212 = vmatprep.subr.mxu0 0.0
    %213 = vmatpush1.msra.mxu0 0.0
    %214 = vmatprep.subr.mxu0 0.0
    %215 = vmatpush1.msra.mxu0 0.0
    %216 = vmatprep.subr.mxu0 0.0
    %217 = vmatpush1.msra.mxu0 0.0
    %218 = vmatprep.subr.mxu0 0.0
    %219 = vmatpush1.msra.mxu0 0.0
    %220 = vmatprep.subr.mxu0 0.0
    %221 = vmatpush1.msra.mxu0 0.0
    %222 = vmatprep.subr.mxu0 0.0
    %223 = vmatpush1.msra.mxu0 0.0
    %224 = vmatprep.subr.mxu0 0.0
    %225 = vmatpush1.msra.mxu0 0.0
    %226 = vmatprep.subr.mxu0 0.0
    %227 = vmatpush1.msra.mxu0 0.0
    %228 = vmatprep.subr.mxu0 0.0
    %229 = vmatpush1.msra.mxu0 0.0
    %230 = vmatprep.mubr.f32.mxu0 0.0
    %231 = vmatmul.mubr.f32.gmra.mrb[0].mxu0 %v127
    %v232 = vpop.f32.mrb[0].mxu0
    %v233 = vadd.f32 %v164, %v232
    %v234 = vpop.f32.mrb[0].mxu0
    %235 = vmatprep.mubr.f32.mxu0 0.0
    %236 = vmatmul.mubr.f32.gmra.mrb[0].mxu0 %v128
    %v237 = vpop.f32.mrb[0].mxu0
    %v238 = vadd.f32 %v164, %v237
    %v239 = vpop.f32.mrb[0].mxu0
    %240 = vmatprep.mubr.f32.mxu0 0.0
    %241 = vmatmul.mubr.f32.gmra.mrb[0].mxu0 %v129
    %v242 = vpop.f32.mrb[0].mxu0
    %v243 = vadd.f32 %v164, %v242
    %v244 = vpop.f32.mrb[0].mxu0
    %245 = vmatprep.mubr.f32.mxu0 0.0
    %246 = vmatmul.mubr.f32.gmra.mrb[0].mxu0 %v130
    %v247 = vpop.f32.mrb[0].mxu0
    %v248 = vadd.f32 %v164, %v247
    %v249 = vpop.f32.mrb[0].mxu0
    %250 = vmatprep.mubr.f32.mxu0 0.0
    %251 = vmatmul.mubr.f32.gmra.mrb[0].mxu0 %v131
    %v252 = vpop.f32.mrb[0].mxu0
    %v253 = vadd.f32 %v164, %v252
    %v254 = vpop.f32.mrb[0].mxu0
    %255 = vmatprep.mubr.f32.mxu0 0.0
    %256 = vmatmul.mubr.f32.gmra.mrb[0].mxu0 %v132
    %v257 = vpop.f32.mrb[0].mxu0
    %v258 = vadd.f32 %v164, %v257
    %v259 = vpop.f32.mrb[0].mxu0
    %260 = vmatprep.mubr.f32.mxu0 0.0
    %261 = vmatmul.mubr.f32.gmra.mrb[0].mxu0 %v133
    %v262 = vpop.f32.mrb[0].mxu0
    %v263 = vadd.f32 %v164, %v262
    %v264 = vpop.f32.mrb[0].mxu0
    %265 = vmatprep.mubr.f32.mxu0 0.0
    %266 = vmatmul.mubr.f32.gmra.mrb[0].mxu0 %v134
    %v267 = vpop.f32.mrb[0].mxu0
    %v268 = vadd.f32 %v164, %v267
    %v269 = vpop.f32.mrb[0].mxu0
    %270 = vmatprep.mubr.f32.mxu0 0.0
    %271 = vmatmul.mubr.f32.gmra.mrb[0].mxu0 %v135
    %v272 = vpop.f32.mrb[0].mxu0
    %v273 = vadd.f32 %v164, %v272
    %v274 = vpop.f32.mrb[0].mxu0
    %275 = vmatprep.mubr.f32.mxu0 0.0
    %276 = vmatmul.mubr.f32.gmra.mrb[0].mxu0 %v136
    %v277 = vpop.f32.mrb[0].mxu0
    %v278 = vadd.f32 %v164, %v277
    %v279 = vpop.f32.mrb[0].mxu0
    %280 = vmatprep.mubr.f32.mxu0 0.0
    %281 = vmatmul.mubr.f32.gmra.mrb[0].mxu0 %v137
    %v282 = vpop.f32.mrb[0].mxu0
    %v283 = vadd.f32 %v164, %v282
    %v284 = vpop.f32.mrb[0].mxu0
    %285 = vmatprep.mubr.f32.mxu0 0.0
    %286 = vmatmul.mubr.f32.gmra.mrb[0].mxu0 %v138
    %v287 = vpop.f32.mrb[0].mxu0
    %v288 = vadd.f32 %v164, %v287
    %v289 = vpop.f32.mrb[0].mxu0
    %290 = vmatprep.mubr.f32.mxu0 0.0
    %291 = vmatmul.mubr.f32.gmra.mrb[0].mxu0 %v139
    %v292 = vpop.f32.mrb[0].mxu0
    %v293 = vadd.f32 %v164, %v292
    %v294 = vpop.f32.mrb[0].mxu0
    %295 = vmatprep.mubr.f32.mxu0 0.0
    %296 = vmatmul.mubr.f32.gmra.mrb[0].mxu0 %v140
    %v297 = vpop.f32.mrb[0].mxu0
    %v298 = vadd.f32 %v164, %v297
    %v299 = vpop.f32.mrb[0].mxu0
    %300 = vmatprep.mubr.f32.mxu0 0.0
    %301 = vmatmul.mubr.f32.gmra.mrb[0].mxu0 %v141
    %v302 = vpop.f32.mrb[0].mxu0
    %v303 = vadd.f32 %v164, %v302
    %v304 = vpop.f32.mrb[0].mxu0
    %305 = vmatprep.mubr.f32.mxu0 0.0
    %306 = vmatmul.mubr.f32.gmra.mrb[0].mxu0 %v142
    %v307 = vpop.f32.mrb[0].mxu0
    %v308 = vadd.f32 %v164, %v307
    %v309 = vpop.f32.mrb[0].mxu0
    %310 = vdwg.mxu0
    %v311 = vmax.f32 %v233, 0.0
    %v312 = vmax.f32 %v238, 0.0
    %v313 = vmax.f32 %v243, 0.0
    %v314 = vmax.f32 %v248, 0.0
    %v315 = vmax.f32 %v253, 0.0
    %v316 = vmax.f32 %v258, 0.0
    %v317 = vmax.f32 %v263, 0.0
    %v318 = vmax.f32 %v268, 0.0
    %v319 = vmax.f32 %v273, 0.0
    %v320 = vmax.f32 %v278, 0.0
    %v321 = vmax.f32 %v283, 0.0
    %v322 = vmax.f32 %v288, 0.0
    %v323 = vmax.f32 %v293, 0.0
    %v324 = vmax.f32 %v298, 0.0
    %v325 = vmax.f32 %v303, 0.0
    %v326 = vmax.f32 %v308, 0.0
    %v327 = vld [vmem:[#allocation2] sm:$0xff]
    %v328 = vld [vmem:[#allocation2 + $0x8] sm:$0xff]
    %v329 = vld [vmem:[#allocation2 + $0x10] sm:$0xff]
    %v330 = vld [vmem:[#allocation2 + $0x18] sm:$0xff]
    %v331 = vld [vmem:[#allocation2 + $0x20] sm:$0xff]
    %v332 = vld [vmem:[#allocation2 + $0x28] sm:$0xff]
    %v333 = vld [vmem:[#allocation2 + $0x30] sm:$0xff]
    %v334 = vld [vmem:[#allocation2 + $0x38] sm:$0xff]
    %v335 = vld [vmem:[#allocation2 + $0x40] sm:$0xff]
    %v336 = vld [vmem:[#allocation2 + $0x48] sm:$0xff]
    %v337 = vld [vmem:[#allocation2 + $0x50] sm:$0xff]
    %v338 = vld [vmem:[#allocation2 + $0x58] sm:$0xff]
    %v339 = vld [vmem:[#allocation2 + $0x60] sm:$0xff]
    %v340 = vld [vmem:[#allocation2 + $0x68] sm:$0xff]
    %v341 = vld [vmem:[#allocation2 + $0x70] sm:$0xff]
    %v342 = vld [vmem:[#allocation2 + $0x78] sm:$0xff]
    %v343 = vld [vmem:[#allocation8] sm:$0xff]
    %v344 = vld [vmem:[#allocation8 + $0x8] sm:$0xff]
    %v345 = vld [vmem:[#allocation8 + $0x10] sm:$0xff]
    %v346 = vld [vmem:[#allocation8 + $0x18] sm:$0xff]
    %v347 = vld [vmem:[#allocation8 + $0x20] sm:$0xff]
    %v348 = vld [vmem:[#allocation8 + $0x28] sm:$0xff]
    %v349 = vld [vmem:[#allocation8 + $0x30] sm:$0xff]
    %v350 = vld [vmem:[#allocation8 + $0x38] sm:$0xff]
    %v351 = vld [vmem:[#allocation8 + $0x40] sm:$0xff]
    %v352 = vld [vmem:[#allocation8 + $0x48] sm:$0xff]
    %v353 = vld [vmem:[#allocation8 + $0x50] sm:$0xff]
    %v354 = vld [vmem:[#allocation8 + $0x58] sm:$0xff]
    %v355 = vld [vmem:[#allocation8 + $0x60] sm:$0xff]
    %v356 = vld [vmem:[#allocation8 + $0x68] sm:$0xff]
    %v357 = vld [vmem:[#allocation8 + $0x70] sm:$0xff]
    %v358 = vld [vmem:[#allocation8 + $0x78] sm:$0xff]
    %359 = vmatprep.subr.mxu0 0.0
    %360 = vmatpush1.msra.mxu0 %v343
    %361 = vmatprep.subr.mxu0 0.0
    %362 = vmatpush1.msra.mxu0 %v344
    %363 = vmatprep.subr.mxu0 0.0
    %364 = vmatpush1.msra.mxu0 %v345
    %365 = vmatprep.subr.mxu0 0.0
    %366 = vmatpush1.msra.mxu0 %v346
    %367 = vmatprep.subr.mxu0 0.0
    %368 = vmatpush1.msra.mxu0 %v347
    %369 = vmatprep.subr.mxu0 0.0
    %370 = vmatpush1.msra.mxu0 %v348
    %371 = vmatprep.subr.mxu0 0.0
    %372 = vmatpush1.msra.mxu0 %v349
    %373 = vmatprep.subr.mxu0 0.0
    %374 = vmatpush1.msra.mxu0 %v350
    %375 = vmatprep.subr.mxu0 0.0
    %376 = vmatpush1.msra.mxu0 %v351
    %377 = vmatprep.subr.mxu0 0.0
    %378 = vmatpush1.msra.mxu0 %v352
    %379 = vmatprep.subr.mxu0 0.0
    %380 = vmatpush1.msra.mxu0 %v353
    %381 = vmatprep.subr.mxu0 0.0
    %382 = vmatpush1.msra.mxu0 %v354
    %383 = vmatprep.subr.mxu0 0.0
    %384 = vmatpush1.msra.mxu0 %v355
    %385 = vmatprep.subr.mxu0 0.0
    %386 = vmatpush1.msra.mxu0 %v356
    %387 = vmatprep.subr.mxu0 0.0
    %388 = vmatpush1.msra.mxu0 %v357
    %389 = vmatprep.subr.mxu0 0.0
    %390 = vmatpush1.msra.mxu0 %v358
    %391 = vmatprep.subr.mxu0 0.0
    %392 = vmatpush1.msra.mxu0 0.0
    %393 = vmatprep.subr.mxu0 0.0
    %394 = vmatpush1.msra.mxu0 0.0
    %395 = vmatprep.subr.mxu0 0.0
    %396 = vmatpush1.msra.mxu0 0.0
    %397 = vmatprep.subr.mxu0 0.0
    %398 = vmatpush1.msra.mxu0 0.0
    %399 = vmatprep.subr.mxu0 0.0
    %400 = vmatpush1.msra.mxu0 0.0
    %401 = vmatprep.subr.mxu0 0.0
    %402 = vmatpush1.msra.mxu0 0.0
    %403 = vmatprep.subr.mxu0 0.0
    %404 = vmatpush1.msra.mxu0 0.0
    %405 = vmatprep.subr.mxu0 0.0
    %406 = vmatpush1.msra.mxu0 0.0
    %407 = vmatprep.subr.mxu0 0.0
    %408 = vmatpush1.msra.mxu0 0.0
    %409 = vmatprep.subr.mxu0 0.0
    %410 = vmatpush1.msra.mxu0 0.0
    %411 = vmatprep.subr.mxu0 0.0
    %412 = vmatpush1.msra.mxu0 0.0
    %413 = vmatprep.subr.mxu0 0.0
    %414 = vmatpush1.msra.mxu0 0.0
    %415 = vmatprep.subr.mxu0 0.0
    %416 = vmatpush1.msra.mxu0 0.0
    %417 = vmatprep.subr.mxu0 0.0
    %418 = vmatpush1.msra.mxu0 0.0
    %419 = vmatprep.subr.mxu0 0.0
    %420 = vmatpush1.msra.mxu0 0.0
    %421 = vmatprep.subr.mxu0 0.0
    %422 = vmatpush1.msra.mxu0 0.0
    %423 = vmatprep.mubr.f32.mxu0 0.0
    %424 = vmatmul.mubr.f32.gmra.mrb[0].mxu0 %v311
    %v425 = vpop.f32.mrb[0].mxu0
    %v426 = vadd.f32 0.0, %v425
    %v427 = vpop.f32.mrb[0].mxu0
    %428 = vmatprep.mubr.f32.mxu0 0.0
    %429 = vmatmul.mubr.f32.gmra.mrb[0].mxu0 %v312
    %v430 = vpop.f32.mrb[0].mxu0
    %v431 = vadd.f32 0.0, %v430
    %v432 = vpop.f32.mrb[0].mxu0
    %433 = vmatprep.mubr.f32.mxu0 0.0
    %434 = vmatmul.mubr.f32.gmra.mrb[0].mxu0 %v313
    %v435 = vpop.f32.mrb[0].mxu0
    %v436 = vadd.f32 0.0, %v435
    %v437 = vpop.f32.mrb[0].mxu0
    %438 = vmatprep.mubr.f32.mxu0 0.0
    %439 = vmatmul.mubr.f32.gmra.mrb[0].mxu0 %v314
    %v440 = vpop.f32.mrb[0].mxu0
    %v441 = vadd.f32 0.0, %v440
    %v442 = vpop.f32.mrb[0].mxu0
    %443 = vmatprep.mubr.f32.mxu0 0.0
    %444 = vmatmul.mubr.f32.gmra.mrb[0].mxu0 %v315
    %v445 = vpop.f32.mrb[0].mxu0
    %v446 = vadd.f32 0.0, %v445
    %v447 = vpop.f32.mrb[0].mxu0
    %448 = vmatprep.mubr.f32.mxu0 0.0
    %449 = vmatmul.mubr.f32.gmra.mrb[0].mxu0 %v316
    %v450 = vpop.f32.mrb[0].mxu0
    %v451 = vadd.f32 0.0, %v450
    %v452 = vpop.f32.mrb[0].mxu0
    %453 = vmatprep.mubr.f32.mxu0 0.0
    %454 = vmatmul.mubr.f32.gmra.mrb[0].mxu0 %v317
    %v455 = vpop.f32.mrb[0].mxu0
    %v456 = vadd.f32 0.0, %v455
    %v457 = vpop.f32.mrb[0].mxu0
    %458 = vmatprep.mubr.f32.mxu0 0.0
    %459 = vmatmul.mubr.f32.gmra.mrb[0].mxu0 %v318
    %v460 = vpop.f32.mrb[0].mxu0
    %v461 = vadd.f32 0.0, %v460
    %v462 = vpop.f32.mrb[0].mxu0
    %463 = vmatprep.mubr.f32.mxu0 0.0
    %464 = vmatmul.mubr.f32.gmra.mrb[0].mxu0 %v319
    %v465 = vpop.f32.mrb[0].mxu0
    %v466 = vadd.f32 0.0, %v465
    %v467 = vpop.f32.mrb[0].mxu0
    %468 = vmatprep.mubr.f32.mxu0 0.0
    %469 = vmatmul.mubr.f32.gmra.mrb[0].mxu0 %v320
    %v470 = vpop.f32.mrb[0].mxu0
    %v471 = vadd.f32 0.0, %v470
    %v472 = vpop.f32.mrb[0].mxu0
    %473 = vmatprep.mubr.f32.mxu0 0.0
    %474 = vmatmul.mubr.f32.gmra.mrb[0].mxu0 %v321
    %v475 = vpop.f32.mrb[0].mxu0
    %v476 = vadd.f32 0.0, %v475
    %v477 = vpop.f32.mrb[0].mxu0
    %478 = vmatprep.mubr.f32.mxu0 0.0
    %479 = vmatmul.mubr.f32.gmra.mrb[0].mxu0 %v322
    %v480 = vpop.f32.mrb[0].mxu0
    %v481 = vadd.f32 0.0, %v480
    %v482 = vpop.f32.mrb[0].mxu0
    %483 = vmatprep.mubr.f32.mxu0 0.0
    %484 = vmatmul.mubr.f32.gmra.mrb[0].mxu0 %v323
    %v485 = vpop.f32.mrb[0].mxu0
    %v486 = vadd.f32 0.0, %v485
    %v487 = vpop.f32.mrb[0].mxu0
    %488 = vmatprep.mubr.f32.mxu0 0.0
    %489 = vmatmul.mubr.f32.gmra.mrb[0].mxu0 %v324
    %v490 = vpop.f32.mrb[0].mxu0
    %v491 = vadd.f32 0.0, %v490
    %v492 = vpop.f32.mrb[0].mxu0
    %493 = vmatprep.mubr.f32.mxu0 0.0
    %494 = vmatmul.mubr.f32.gmra.mrb[0].mxu0 %v325
    %v495 = vpop.f32.mrb[0].mxu0
    %v496 = vadd.f32 0.0, %v495
    %v497 = vpop.f32.mrb[0].mxu0
    %498 = vmatprep.mubr.f32.mxu0 0.0
    %499 = vmatmul.mubr.f32.gmra.mrb[0].mxu0 %v326
    %v500 = vpop.f32.mrb[0].mxu0
    %v501 = vadd.f32 0.0, %v500
    %v502 = vpop.f32.mrb[0].mxu0
    %503 = vdwg.mxu0
    %v504 = vadd.f32 %v327, %v426
    %v505 = vadd.f32 %v328, %v431
    %v506 = vadd.f32 %v329, %v436
    %v507 = vadd.f32 %v330, %v441
    %v508 = vadd.f32 %v331, %v446
    %v509 = vadd.f32 %v332, %v451
    %v510 = vadd.f32 %v333, %v456
    %v511 = vadd.f32 %v334, %v461
    %v512 = vadd.f32 %v335, %v466
    %v513 = vadd.f32 %v336, %v471
    %v514 = vadd.f32 %v337, %v476
    %v515 = vadd.f32 %v338, %v481
    %v516 = vadd.f32 %v339, %v486
    %v517 = vadd.f32 %v340, %v491
    %v518 = vadd.f32 %v341, %v496
    %v519 = vadd.f32 %v342, %v501
    %520 = vst [vmem:[#allocation2] sm:$0xff] %v504
    %521 = vst [vmem:[#allocation2 + $0x8] sm:$0xff] %v505
    %522 = vst [vmem:[#allocation2 + $0x10] sm:$0xff] %v506
    %523 = vst [vmem:[#allocation2 + $0x18] sm:$0xff] %v507
    %524 = vst [vmem:[#allocation2 + $0x20] sm:$0xff] %v508
    %525 = vst [vmem:[#allocation2 + $0x28] sm:$0xff] %v509
    %526 = vst [vmem:[#allocation2 + $0x30] sm:$0xff] %v510
    %527 = vst [vmem:[#allocation2 + $0x38] sm:$0xff] %v511
    %528 = vst [vmem:[#allocation2 + $0x40] sm:$0xff] %v512
    %529 = vst [vmem:[#allocation2 + $0x48] sm:$0xff] %v513
    %530 = vst [vmem:[#allocation2 + $0x50] sm:$0xff] %v514
    %531 = vst [vmem:[#allocation2 + $0x58] sm:$0xff] %v515
    %532 = vst [vmem:[#allocation2 + $0x60] sm:$0xff] %v516
    %533 = vst [vmem:[#allocation2 + $0x68] sm:$0xff] %v517
    %534 = vst [vmem:[#allocation2 + $0x70] sm:$0xff] %v518
    %535 = vst [vmem:[#allocation2 + $0x78] sm:$0xff] %v519
    // Predicated region
    $region46: #{tpu_custom_call.1} parent=1 // pred_check
      %p536 = pneg %p68
    $region47: #{tpu_custom_call.1} parent=1 // pred_check_branch
      %538 = sbr.rel (%p536) target = $region49
    $region48: #{tpu_custom_call.1} parent=1 // pred_region
      %v539 = vld [vmem:[#allocation2] sm:$0xff]
      %v540 = vld [vmem:[#allocation2 + $0x8] sm:$0xff]
      %v541 = vld [vmem:[#allocation2 + $0x10] sm:$0xff]
      %v542 = vld [vmem:[#allocation2 + $0x18] sm:$0xff]
      %v543 = vld [vmem:[#allocation2 + $0x20] sm:$0xff]
      %v544 = vld [vmem:[#allocation2 + $0x28] sm:$0xff]
      %v545 = vld [vmem:[#allocation2 + $0x30] sm:$0xff]
      %v546 = vld [vmem:[#allocation2 + $0x38] sm:$0xff]
      %v547 = vld [vmem:[#allocation2 + $0x40] sm:$0xff]
      %v548 = vld [vmem:[#allocation2 + $0x48] sm:$0xff]
      %v549 = vld [vmem:[#allocation2 + $0x50] sm:$0xff]
      %v550 = vld [vmem:[#allocation2 + $0x58] sm:$0xff]
      %v551 = vld [vmem:[#allocation2 + $0x60] sm:$0xff]
      %v552 = vld [vmem:[#allocation2 + $0x68] sm:$0xff]
      %v553 = vld [vmem:[#allocation2 + $0x70] sm:$0xff]
      %v554 = vld [vmem:[#allocation2 + $0x78] sm:$0xff]
      %555 = vadd.xlane.f32.xlu0 %v539
      %v556 = vpop.xlane.xlu0 %555
      %557 = vadd.xlane.f32.xlu0 %v540
      %v558 = vpop.xlane.xlu0 %557
      %559 = vadd.xlane.f32.xlu0 %v541
      %v560 = vpop.xlane.xlu0 %559
      %561 = vadd.xlane.f32.xlu0 %v542
      %v562 = vpop.xlane.xlu0 %561
      %563 = vadd.xlane.f32.xlu0 %v543
      %v564 = vpop.xlane.xlu0 %563
      %565 = vadd.xlane.f32.xlu0 %v544
      %v566 = vpop.xlane.xlu0 %565
      %567 = vadd.xlane.f32.xlu0 %v545
      %v568 = vpop.xlane.xlu0 %567
      %569 = vadd.xlane.f32.xlu0 %v546
      %v570 = vpop.xlane.xlu0 %569
      %571 = vadd.xlane.f32.xlu0 %v547
      %v572 = vpop.xlane.xlu0 %571
      %573 = vadd.xlane.f32.xlu0 %v548
      %v574 = vpop.xlane.xlu0 %573
      %575 = vadd.xlane.f32.xlu0 %v549
      %v576 = vpop.xlane.xlu0 %575
      %577 = vadd.xlane.f32.xlu0 %v550
      %v578 = vpop.xlane.xlu0 %577
      %579 = vadd.xlane.f32.xlu0 %v551
      %v580 = vpop.xlane.xlu0 %579
      %581 = vadd.xlane.f32.xlu0 %v552
      %v582 = vpop.xlane.xlu0 %581
      %583 = vadd.xlane.f32.xlu0 %v553
      %v584 = vpop.xlane.xlu0 %583
      %585 = vadd.xlane.f32.xlu0 %v554
      %v586 = vpop.xlane.xlu0 %585
      %v587 = vmul.f32 %v556, 0.03125
      %v588 = vmul.f32 %v558, 0.03125
      %v589 = vmul.f32 %v560, 0.03125
      %v590 = vmul.f32 %v562, 0.03125
      %v591 = vmul.f32 %v564, 0.03125
      %v592 = vmul.f32 %v566, 0.03125
      %v593 = vmul.f32 %v568, 0.03125
      %v594 = vmul.f32 %v570, 0.03125
      %v595 = vmul.f32 %v572, 0.03125
      %v596 = vmul.f32 %v574, 0.03125
      %v597 = vmul.f32 %v576, 0.03125
      %v598 = vmul.f32 %v578, 0.03125
      %v599 = vmul.f32 %v580, 0.03125
      %v600 = vmul.f32 %v582, 0.03125
      %v601 = vmul.f32 %v584, 0.03125
      %v602 = vmul.f32 %v586, 0.03125
      %v603 = vsub.f32 %v539, %v587
      %v604 = vsub.f32 %v540, %v588
      %v605 = vsub.f32 %v541, %v589
      %v606 = vsub.f32 %v542, %v590
      %v607 = vsub.f32 %v543, %v591
      %v608 = vsub.f32 %v544, %v592
      %v609 = vsub.f32 %v545, %v593
      %v610 = vsub.f32 %v546, %v594
      %v611 = vsub.f32 %v547, %v595
      %v612 = vsub.f32 %v548, %v596
      %v613 = vsub.f32 %v549, %v597
      %v614 = vsub.f32 %v550, %v598
      %v615 = vsub.f32 %v551, %v599
      %v616 = vsub.f32 %v552, %v600
      %v617 = vsub.f32 %v553, %v601
      %v618 = vsub.f32 %v554, %v602
      %v619 = vmul.f32 %v603, %v603
      %v620 = vmul.f32 %v604, %v604
      %v621 = vmul.f32 %v605, %v605
      %v622 = vmul.f32 %v606, %v606
      %v623 = vmul.f32 %v607, %v607
      %v624 = vmul.f32 %v608, %v608
      %v625 = vmul.f32 %v609, %v609
      %v626 = vmul.f32 %v610, %v610
      %v627 = vmul.f32 %v611, %v611
      %v628 = vmul.f32 %v612, %v612
      %v629 = vmul.f32 %v613, %v613
      %v630 = vmul.f32 %v614, %v614
      %v631 = vmul.f32 %v615, %v615
      %v632 = vmul.f32 %v616, %v616
      %v633 = vmul.f32 %v617, %v617
      %v634 = vmul.f32 %v618, %v618
      %v635 = vlaneseq
      %v636 = vand.u32 %v635, 127
      %vm637 = vcmp.lt.s32.totalorder %v636, 32
      %v638 = vsel %vm637, 1, 0
      %vm639 = vcmp.eq.s32.totalorder %v638, 1
      %v640 = vsel %vm639, %v619, 0.0
      %v641 = vsel %vm639, %v620, 0.0
      %v642 = vsel %vm639, %v621, 0.0
      %v643 = vsel %vm639, %v622, 0.0
      %v644 = vsel %vm639, %v623, 0.0
      %v645 = vsel %vm639, %v624, 0.0
      %v646 = vsel %vm639, %v625, 0.0
      %v647 = vsel %vm639, %v626, 0.0
      %v648 = vsel %vm639, %v627, 0.0
      %v649 = vsel %vm639, %v628, 0.0
      %v650 = vsel %vm639, %v629, 0.0
      %v651 = vsel %vm639, %v630, 0.0
      %v652 = vsel %vm639, %v631, 0.0
      %v653 = vsel %vm639, %v632, 0.0
      %v654 = vsel %vm639, %v633, 0.0
      %v655 = vsel %vm639, %v634, 0.0
      %656 = vadd.xlane.f32.xlu0 %v640
      %v657 = vpop.xlane.xlu0 %656
      %658 = vadd.xlane.f32.xlu0 %v641
      %v659 = vpop.xlane.xlu0 %658
      %660 = vadd.xlane.f32.xlu0 %v642
      %v661 = vpop.xlane.xlu0 %660
      %662 = vadd.xlane.f32.xlu0 %v643
      %v663 = vpop.xlane.xlu0 %662
      %664 = vadd.xlane.f32.xlu0 %v644
      %v665 = vpop.xlane.xlu0 %664
      %666 = vadd.xlane.f32.xlu0 %v645
      %v667 = vpop.xlane.xlu0 %666
      %668 = vadd.xlane.f32.xlu0 %v646
      %v669 = vpop.xlane.xlu0 %668
      %670 = vadd.xlane.f32.xlu0 %v647
      %v671 = vpop.xlane.xlu0 %670
      %672 = vadd.xlane.f32.xlu0 %v648
      %v673 = vpop.xlane.xlu0 %672
      %674 = vadd.xlane.f32.xlu0 %v649
      %v675 = vpop.xlane.xlu0 %674
      %676 = vadd.xlane.f32.xlu0 %v650
      %v677 = vpop.xlane.xlu0 %676
      %678 = vadd.xlane.f32.xlu0 %v651
      %v679 = vpop.xlane.xlu0 %678
      %680 = vadd.xlane.f32.xlu0 %v652
      %v681 = vpop.xlane.xlu0 %680
      %682 = vadd.xlane.f32.xlu0 %v653
      %v683 = vpop.xlane.xlu0 %682
      %684 = vadd.xlane.f32.xlu0 %v654
      %v685 = vpop.xlane.xlu0 %684
      %686 = vadd.xlane.f32.xlu0 %v655
      %v687 = vpop.xlane.xlu0 %686
      %v688 = vmul.f32 %v657, 0.03125
      %v689 = vmul.f32 %v659, 0.03125
      %v690 = vmul.f32 %v661, 0.03125
      %v691 = vmul.f32 %v663, 0.03125
      %v692 = vmul.f32 %v665, 0.03125
      %v693 = vmul.f32 %v667, 0.03125
      %v694 = vmul.f32 %v669, 0.03125
      %v695 = vmul.f32 %v671, 0.03125
      %v696 = vmul.f32 %v673, 0.03125
      %v697 = vmul.f32 %v675, 0.03125
      %v698 = vmul.f32 %v677, 0.03125
      %v699 = vmul.f32 %v679, 0.03125
      %v700 = vmul.f32 %v681, 0.03125
      %v701 = vmul.f32 %v683, 0.03125
      %v702 = vmul.f32 %v685, 0.03125
      %v703 = vmul.f32 %v687, 0.03125
      %v704 = vadd.f32 %v688, 1e-06
      %v705 = vadd.f32 %v689, 1e-06
      %v706 = vadd.f32 %v690, 1e-06
      %v707 = vadd.f32 %v691, 1e-06
      %v708 = vadd.f32 %v692, 1e-06
      %v709 = vadd.f32 %v693, 1e-06
      %v710 = vadd.f32 %v694, 1e-06
      %v711 = vadd.f32 %v695, 1e-06
      %v712 = vadd.f32 %v696, 1e-06
      %v713 = vadd.f32 %v697, 1e-06
      %v714 = vadd.f32 %v698, 1e-06
      %v715 = vadd.f32 %v699, 1e-06
      %v716 = vadd.f32 %v700, 1e-06
      %v717 = vadd.f32 %v701, 1e-06
      %v718 = vadd.f32 %v702, 1e-06
      %v719 = vadd.f32 %v703, 1e-06
      %v720 = vrsqrt.pop %v704
      %v721 = vrsqrt.pop %v705
      %v722 = vrsqrt.pop %v706
      %v723 = vrsqrt.pop %v707
      %v724 = vrsqrt.pop %v708
      %v725 = vrsqrt.pop %v709
      %v726 = vrsqrt.pop %v710
      %v727 = vrsqrt.pop %v711
      %v728 = vrsqrt.pop %v712
      %v729 = vrsqrt.pop %v713
      %v730 = vrsqrt.pop %v714
      %v731 = vrsqrt.pop %v715
      %v732 = vrsqrt.pop %v716
      %v733 = vrsqrt.pop %v717
      %v734 = vrsqrt.pop %v718
      %v735 = vrsqrt.pop %v719
      %v736 = vmul.f32 %v603, %v720
      %v737 = vmul.f32 %v604, %v721
      %v738 = vmul.f32 %v605, %v722
      %v739 = vmul.f32 %v606, %v723
      %v740 = vmul.f32 %v607, %v724
      %v741 = vmul.f32 %v608, %v725
      %v742 = vmul.f32 %v609, %v726
      %v743 = vmul.f32 %v610, %v727
      %v744 = vmul.f32 %v611, %v728
      %v745 = vmul.f32 %v612, %v729
      %v746 = vmul.f32 %v613, %v730
      %v747 = vmul.f32 %v614, %v731
      %v748 = vmul.f32 %v615, %v732
      %v749 = vmul.f32 %v616, %v733
      %v750 = vmul.f32 %v617, %v734
      %v751 = vmul.f32 %v618, %v735
      %v752 = vld [vmem:[%s5] sm:$0x1]
      %v754 = vlaneseq
      %v755 = vshrl.u32 %v754, 7
      %v756 = vsub.s32 0, %v755
      %v757 = vrot.slane %v752, %v756
      %v759 = vmul.f32 %v736, %v757
      %v760 = vmul.f32 %v737, %v757
      %v761 = vmul.f32 %v738, %v757
      %v762 = vmul.f32 %v739, %v757
      %v763 = vmul.f32 %v740, %v757
      %v764 = vmul.f32 %v741, %v757
      %v765 = vmul.f32 %v742, %v757
      %v766 = vmul.f32 %v743, %v757
      %v767 = vmul.f32 %v744, %v757
      %v768 = vmul.f32 %v745, %v757
      %v769 = vmul.f32 %v746, %v757
      %v770 = vmul.f32 %v747, %v757
      %v771 = vmul.f32 %v748, %v757
      %v772 = vmul.f32 %v749, %v757
      %v773 = vmul.f32 %v750, %v757
      %v774 = vmul.f32 %v751, %v757
      %v775 = vld [vmem:[%s6] sm:$0x1]
      %v777 = vlaneseq
      %v778 = vshrl.u32 %v777, 7
      %v779 = vsub.s32 0, %v778
      %v780 = vrot.slane %v775, %v779
      %v782 = vadd.f32 %v759, %v780
      %v783 = vadd.f32 %v760, %v780
      %v784 = vadd.f32 %v761, %v780
      %v785 = vadd.f32 %v762, %v780
      %v786 = vadd.f32 %v763, %v780
      %v787 = vadd.f32 %v764, %v780
      %v788 = vadd.f32 %v765, %v780
      %v789 = vadd.f32 %v766, %v780
      %v790 = vadd.f32 %v767, %v780
      %v791 = vadd.f32 %v768, %v780
      %v792 = vadd.f32 %v769, %v780
      %v793 = vadd.f32 %v770, %v780
      %v794 = vadd.f32 %v771, %v780
      %v795 = vadd.f32 %v772, %v780
      %v796 = vadd.f32 %v773, %v780
      %v797 = vadd.f32 %v774, %v780
      %798 = vst [vmem:[#allocation9] sm:$0xff] %v782
      %799 = vst [vmem:[#allocation9 + $0x8] sm:$0xff] %v783
      %800 = vst [vmem:[#allocation9 + $0x10] sm:$0xff] %v784
      %801 = vst [vmem:[#allocation9 + $0x18] sm:$0xff] %v785
      %802 = vst [vmem:[#allocation9 + $0x20] sm:$0xff] %v786
      %803 = vst [vmem:[#allocation9 + $0x28] sm:$0xff] %v787
      %804 = vst [vmem:[#allocation9 + $0x30] sm:$0xff] %v788
      %805 = vst [vmem:[#allocation9 + $0x38] sm:$0xff] %v789
      %806 = vst [vmem:[#allocation9 + $0x40] sm:$0xff] %v790
      %807 = vst [vmem:[#allocation9 + $0x48] sm:$0xff] %v791
      %808 = vst [vmem:[#allocation9 + $0x50] sm:$0xff] %v792
      %809 = vst [vmem:[#allocation9 + $0x58] sm:$0xff] %v793
      %810 = vst [vmem:[#allocation9 + $0x60] sm:$0xff] %v794
      %811 = vst [vmem:[#allocation9 + $0x68] sm:$0xff] %v795
      %812 = vst [vmem:[#allocation9 + $0x70] sm:$0xff] %v796
      %813 = vst [vmem:[#allocation9 + $0x78] sm:$0xff] %v797
    $region49: #{tpu_custom_call.1} parent=1 // pred_fallthru
      _
    // Predicated region
    $region50: #{tpu_custom_call.1} parent=1 // pred_check
      _
    $region51: #{tpu_custom_call.1} parent=1 // pred_check_branch
      %815 = sbr.rel (0) target = $region53
    $region52: #{tpu_custom_call.1} parent=1 // pred_region
      %s817 = ssub.s32 2048, 2048
      %818 = vsyncadd [#allocation5], %s817
      %s819 = sshll.u32 [#allocation9], 4
      %s820 = int_to_ptr.vmem [resolvable:$true] %s819
      %825 = dma.vmem_to_hbm [thread:$0]  %s820, 2048, %s7, [#allocation5], 128, 128, 8
    $region53: #{tpu_custom_call.1} parent=1 // pred_fallthru
      _
    // Predicated region
    $region54: #{tpu_custom_call.1} parent=1 // pred_check
      _
    $region55: #{tpu_custom_call.1} parent=1 // pred_check_branch
      %827 = sbr.rel (0) target = $region57
    $region56: #{tpu_custom_call.1} parent=1 // pred_region
      %828 = dma.done [#allocation5], 2048
    $region57: #{tpu_custom_call.1} parent=1 // pred_fallthru
      _
    %829 = vsyncpa [#allocation4], 1
    %830 = vsyncpa [#allocation7], 1
    %831 = vsyncpa [#allocation5], 1

</llo_original>
